<compile_context>
chip_gen: v7x
topology: tpu7x:2x2x1
jax: 0.10.0
libtpu: 0.0.40
codegen_flags: <defaults>
</compile_context>

<pallas_src>
import jax
import jax.numpy as jnp
from jax.experimental import pallas as pl
from jax.experimental.pallas import tpu as pltpu


# ------------------------------- kernel ------------------------------------ #

def adapter_kernel(x_ref, w1_ref, w2_ref, o_ref):
    # x_ref:  (tm, c_in)      row tile of the input, native dtype
    # w1_ref: (c_in, hidden)  first-layer weight (pre-transposed), VMEM-resident
    # w2_ref: (hidden, c_in)  second-layer weight (pre-transposed), VMEM-resident
    # o_ref:  (tm, c_in)      output tile, x's dtype
    cdt = w1_ref.dtype
    x = x_ref[...].astype(cdt)                        # in-kernel cast (VPU, hidden)
    h = jnp.dot(x, w1_ref[...], preferred_element_type=jnp.float32)
    h = jnp.maximum(h, 0.0)                           # ReLU 1 on f32 accumulator
    y = jnp.dot(h.astype(cdt), w2_ref[...], preferred_element_type=jnp.float32)
    y = jnp.maximum(y, 0.0)                           # ReLU 2 on f32 accumulator
    o_ref[...] = y.astype(o_ref.dtype)


# ------------------------------- helpers ------------------------------------ #

def _round_up(x, m):
    return ((x + m - 1) // m) * m


def _vmem_capacity_bytes():
    try:
        return int(pltpu.get_tpu_info().vmem_capacity_bytes)
    except Exception:
        return 64 * 1024 * 1024            # conservative: v7x per-TensorCore VMEM


def _buffered_supported():
    # One-time capability probe: only constructs a BlockSpec (no compile), so a
    # genuine lowering/OOM error on the real call can never be masked by this.
    try:
        pl.BlockSpec((8, 128), lambda i: (0, 0), pipeline_mode=pl.Buffered(1))
        return True
    except (AttributeError, TypeError):
        return False


_HAS_BUFFERED = _buffered_supported()


def prepare_adapter_params(w1, w2, compute_dtype=jnp.bfloat16):
    """One-time weight prep: transpose to [c_in, hidden] / [hidden, c_in].

    w1: [hidden, c_in], w2: [c_in, hidden]  (PyTorch nn.Linear layout).
    compute_dtype defaults to bf16 (MXU accumulation is always f32 in-kernel);
    pass jnp.float32 for an exact-f32 path.
    """
    hidden, c_in = w1.shape
    assert w2.shape == (c_in, hidden), "w2 must be [c_in, hidden]"
    w1_t = jnp.asarray(w1).T.astype(compute_dtype)    # [c_in, hidden]
    w2_t = jnp.asarray(w2).T.astype(compute_dtype)    # [hidden, c_in]
    return w1_t, w2_t, c_in, hidden


def _choose_tm(n_rows, c_in, hidden, x_isz, out_isz, w_isz, budget_bytes,
               weight_buf_factor):
    """Largest row tile fitting the VMEM budget, with megacore-friendly caps."""
    weight_bytes = weight_buf_factor * 2 * c_in * hidden * w_isz
    avail = max(budget_bytes - weight_bytes, 2 * 1024 * 1024)
    per_row = (2 * c_in * x_isz        # x tile (double-buffered)
               + 2 * c_in * out_isz    # out tile (double-buffered)
               + c_in * w_isz          # x cast to compute dtype
               + hidden * 4            # h, f32 accumulator
               + hidden * w_isz        # h cast for the 2nd dot
               + c_in * 4)             # y, f32 accumulator
    tm = int(avail // per_row)
    tm = min(tm, 1024)                 # ~512-1024 already ~85% of HBM roofline
    if n_rows <= 8:
        return max(int(n_rows), 1)     # single full-dim (unpadded) block
    tm = min(tm, _round_up(n_rows, 8))
    # Megacore: aim for >=4 grid steps (>=2 per v7x TensorCore) when each step
    # still keeps >=256 rows; otherwise still try for >=2 steps total.
    quarter = _round_up(pl.cdiv(n_rows, 4), 8)
    half = _round_up(pl.cdiv(n_rows, 2), 8)
    if quarter >= 256:
        tm = min(tm, quarter)
    elif n_rows >= 16:
        tm = min(tm, half)
    tm = max(8, (tm // 8) * 8)
    if tm >= 256:                      # MXU/lane-friendly multiples of 128
        tm = (tm // 128) * 128
    return int(tm)


def _adapter_call(n, tm, c_in, hidden, x_dtype, vmem_limit, cost):
    w_kwargs = {"pipeline_mode": pl.Buffered(1)} if _HAS_BUFFERED else {}
    return pl.pallas_call(
        adapter_kernel,
        out_shape=jax.ShapeDtypeStruct((n, c_in), x_dtype),
        grid_spec=pltpu.PrefetchScalarGridSpec(
            num_scalar_prefetch=0,
            grid=(pl.cdiv(n, tm),),
            in_specs=[
                pl.BlockSpec((tm, c_in), lambda i: (i, 0)),            # x rows
                pl.BlockSpec((c_in, hidden), lambda i: (0, 0), **w_kwargs),
                pl.BlockSpec((hidden, c_in), lambda i: (0, 0), **w_kwargs),
            ],
            out_specs=pl.BlockSpec((tm, c_in), lambda i: (i, 0)),
        ),
        compiler_params=pltpu.CompilerParams(
            dimension_semantics=("parallel",),
            vmem_limit_bytes=int(vmem_limit),
        ),
        cost_estimate=cost,
    )


# ------------------------------- forward ------------------------------------ #

def adapter_forward(x, params, *, tm=None, vmem_budget_bytes=None):
    """Fused Adapter forward.  x: [..., c_in]; params: prepare_adapter_params()."""
    w1_t, w2_t, c_in, hidden = params
    w_isz = jnp.dtype(w1_t.dtype).itemsize
    x_isz = jnp.dtype(x.dtype).itemsize
    out_isz = x_isz

    orig_shape = x.shape
    assert orig_shape[-1] == c_in, "last dim of x must equal c_in"
    x2d = x.reshape(-1, c_in)
    n = x2d.shape[0]
    if n == 0:
        return jnp.zeros(orig_shape, x.dtype)

    cap = _vmem_capacity_bytes()
    if vmem_budget_bytes is None:
        # ~half of physical VMEM: 32 MiB on v7x (64 MiB/TC), 64 MiB on v5e/v6e.
        vmem_budget_bytes = min(cap // 2, 64 * 1024 * 1024)

    wf = 1 if _HAS_BUFFERED else 2
    if tm is None:
        tm = _choose_tm(n, c_in, hidden, x_isz, out_isz, w_isz,
                        vmem_budget_bytes, wf)
    tm = int(tm)
    if tm >= n:
        tm = n                              # single full-dim block (always legal)
    else:
        tm = max(8, (tm // 8) * 8)          # tiled path: multiple of 8 rows

    # vmem_limit_bytes follows the actual footprint (plus margin), capped by HW.
    footprint = (wf * 2 * c_in * hidden * w_isz
                 + tm * (2 * c_in * x_isz + 2 * c_in * out_isz
                         + c_in * w_isz + hidden * 4 + hidden * w_isz
                         + c_in * 4))
    vmem_limit = max(footprint + 8 * 1024 * 1024, 32 * 1024 * 1024)
    vmem_limit = min(vmem_limit, int(cap * 0.9))

    cost = pl.CostEstimate(
        flops=4 * n * c_in * hidden,
        transcendentals=0,
        bytes_accessed=n * c_in * (x_isz + out_isz) + 2 * c_in * hidden * w_isz,
    )

    # NOTE: ragged batches rely on Pallas partial-last-block semantics: garbage
    # rows in the final input tile are computed but their stores are masked;
    # safe here because there is no cross-row reduction.
    out2d = _adapter_call(n, tm, c_in, hidden, x2d.dtype, vmem_limit, cost)(
        x2d, w1_t, w2_t)
    return out2d.reshape(orig_shape)


def adapter_ref(x, w1, w2):
    """Pure-JAX reference matching the PyTorch module semantics (f32)."""
    h = jnp.maximum(x @ w1.T, 0.0)
    return jnp.maximum(h @ w2.T, 0.0)


# ------------------------------- smoke test --------------------------------- #

if __name__ == "__main__":
    key = jax.random.PRNGKey(0)
    k_x, k_w1, k_w2, k_x2, k_x3 = jax.random.split(key, 5)

    c_in, reduction = 32, 4
    hidden = c_in // reduction

    # PyTorch nn.Linear weight layout: [out_features, in_features].
    w1 = jax.random.normal(k_w1, (hidden, c_in), dtype=jnp.float32) * 0.1
    w2 = jax.random.normal(k_w2, (c_in, hidden), dtype=jnp.float32) * 0.1

    # 1) Default bf16-compute path (f32 accumulation), small aligned batch.
    params_bf16 = prepare_adapter_params(w1, w2)                 # bf16 default
    x = jax.random.normal(k_x, (8, c_in), dtype=jnp.float32)
    ref = adapter_ref(x, w1, w2)
    out = jax.block_until_ready(adapter_forward(x, params_bf16))
    assert out.shape == x.shape and out.dtype == x.dtype
    assert jnp.allclose(out, ref, atol=5e-2, rtol=5e-2), "bf16 mismatch"

    # 2) Exact f32 path.
    params_f32 = prepare_adapter_params(w1, w2, compute_dtype=jnp.float32)
    out_f32 = jax.block_until_ready(adapter_forward(x, params_f32))
    assert jnp.allclose(out_f32, ref, atol=1e-5, rtol=1e-5), "f32 mismatch"

    # 3) Ragged batch with forced tm=8: exercises the partial last row tile
    #    (rows 13..15 of the final block are computed but never stored).
    x2 = jax.random.normal(k_x2, (13, c_in), dtype=jnp.float32)
    out2 = jax.block_until_ready(adapter_forward(x2, params_f32, tm=8))
    assert jnp.allclose(out2, adapter_ref(x2, w1, w2),
                        atol=1e-5, rtol=1e-5), "ragged mismatch"

    # 4) Multi-dim input (batch, seq, c_in) on the auto-tiled multi-step grid.
    x3 = jax.random.normal(k_x3, (2, 16, c_in), dtype=jnp.float32)
    out3 = jax.block_until_ready(adapter_forward(x3, params_f32))
    assert out3.shape == x3.shape
    assert jnp.allclose(out3, adapter_ref(x3, w1, w2),
                        atol=1e-5, rtol=1e-5), "multi-dim mismatch"

    print("KERNEL_OK")
</pallas_src>

<mosaic_0001>
module attributes {stable_mosaic.version = 11 : i64} {
  func.func @adapter_kernel(%arg0: i32, %arg1: memref<8x32xf32, #tpu.memory_space<vmem>>, %arg2: memref<32x8xbf16, #tpu.memory_space<vmem>>, %arg3: memref<8x32xbf16, #tpu.memory_space<vmem>>, %arg4: memref<8x32xf32, #tpu.memory_space<vmem>>) attributes {dimension_semantics = [#tpu.dimension_semantics<parallel>], iteration_bounds = array<i64: 1>, scalar_prefetch = 0 : i64, scratch_operands = 0 : i64, tpu.core_type = #tpu.core_type<tc>, window_params = [{transform_indices = @transform_0, window_bounds = array<i64: 8, 32>}, {pipeline_mode = #tpu.pipeline_mode<synchronous>, transform_indices = @transform_1, window_bounds = array<i64: 32, 8>}, {pipeline_mode = #tpu.pipeline_mode<synchronous>, transform_indices = @transform_2, window_bounds = array<i64: 8, 32>}, {transform_indices = @transform_3, window_bounds = array<i64: 8, 32>}]} {
    %c0 = arith.constant 0 : index
    %c0_0 = arith.constant 0 : index
    %0 = vector.load %arg1[%c0, %c0_0] : memref<8x32xf32, #tpu.memory_space<vmem>>, vector<8x32xf32>
    %1 = arith.truncf %0 : vector<8x32xf32> to vector<8x32xbf16>
    %c0_1 = arith.constant 0 : index
    %c0_2 = arith.constant 0 : index
    %2 = vector.load %arg2[%c0_1, %c0_2] : memref<32x8xbf16, #tpu.memory_space<vmem>>, vector<32x8xbf16>
    %cst = arith.constant dense<0.000000e+00> : vector<8x8xf32>
    %3 = tpu.matmul %1, %2, %cst {dimension_numbers = #tpu.dot_dimension_numbers<[1], [0], [0], [1], [0, 0, 1, 1], [], []>} : vector<8x32xbf16>, vector<32x8xbf16>, vector<8x8xf32> -> vector<8x8xf32>
    %cst_3 = arith.constant 0.000000e+00 : f32
    %4 = vector.broadcast %cst_3 : f32 to vector<8x8xf32>
    %5 = arith.maximumf %3, %4 : vector<8x8xf32>
    %6 = arith.truncf %5 : vector<8x8xf32> to vector<8x8xbf16>
    %c0_4 = arith.constant 0 : index
    %c0_5 = arith.constant 0 : index
    %7 = vector.load %arg3[%c0_4, %c0_5] : memref<8x32xbf16, #tpu.memory_space<vmem>>, vector<8x32xbf16>
    %cst_6 = arith.constant dense<0.000000e+00> : vector<8x32xf32>
    %8 = tpu.matmul %6, %7, %cst_6 {dimension_numbers = #tpu.dot_dimension_numbers<[1], [0], [0], [1], [0, 0, 1, 1], [], []>} : vector<8x8xbf16>, vector<8x32xbf16>, vector<8x32xf32> -> vector<8x32xf32>
    %cst_7 = arith.constant 0.000000e+00 : f32
    %9 = vector.broadcast %cst_7 : f32 to vector<8x32xf32>
    %10 = arith.maximumf %8, %9 : vector<8x32xf32>
    %c0_8 = arith.constant 0 : index
    %c0_9 = arith.constant 0 : index
    %11 = vector.load %arg4[%c0_8, %c0_9] : memref<8x32xf32, #tpu.memory_space<vmem>>, vector<8x32xf32>
    tpu.vector_store %arg4[%c0_8, %c0_9], %10 {strides = array<i32>} : memref<8x32xf32, #tpu.memory_space<vmem>>, vector<8x32xf32>,
    return
  }
  func.func @transform_0(%arg0: i32) -> (i32, i32) {
    %c0_i32 = arith.constant 0 : i32
    %c0_i32_0 = arith.constant 0 : i32
    return %arg0, %c0_i32 : i32, i32
  }
  func.func @transform_1(%arg0: i32) -> (i32, i32) {
    %c0_i32 = arith.constant 0 : i32
    %c0_i32_0 = arith.constant 0 : i32
    %c0_i32_1 = arith.constant 0 : i32
    return %c0_i32, %c0_i32_0 : i32, i32
  }
  func.func @transform_2(%arg0: i32) -> (i32, i32) {
    %c0_i32 = arith.constant 0 : i32
    %c0_i32_0 = arith.constant 0 : i32
    %c0_i32_1 = arith.constant 0 : i32
    return %c0_i32, %c0_i32_0 : i32, i32
  }
  func.func @transform_3(%arg0: i32) -> (i32, i32) {
    %c0_i32 = arith.constant 0 : i32
    %c0_i32_0 = arith.constant 0 : i32
    return %arg0, %c0_i32 : i32, i32
  }
}

</mosaic_0001>

<llo_original>
// kernel: tpu_custom_call.1
$region0: #{tpu_custom_call.1}
  #allocation0 [shape = 'u32[]', space=smem, size = 0x4, offset = 0x4, fixed_abs, tag = 'smem constant byte address 0x4 - core index']
  #allocation1 [shape = 'u32[144,128]{1,0:T(1,128)}', space=vmem, size = 0x12000, scoped, tag = 'internal scratch']
  %s0 = inlined_call_operand.vmem [shape: f32[8,32], index: 0, kind: input, shape index: {}]
  %s1 = inlined_call_operand.vmem [shape: bf16[32,8], index: 1, kind: input, shape index: {}]
  %s2 = inlined_call_operand.vmem [shape: bf16[8,32], index: 2, kind: input, shape index: {}]
  %s3 = inlined_call_operand.hbm [shape: f32[8,32], index: 3, kind: output, shape index: {}]
  %s4 = sld [smem:[#allocation0]]
  $region22: #{tpu_custom_call.1} parent=0
    _
  %s6 = ssub.s32 1, %s4
  %s7 = scalar_select 0, %s6, %s4
  $region1: #{tpu_custom_call.1} parent=0
    #allocation2 [shape = 'u8[4096]{0}', space=vmem, size = 0x1000, scoped, tag = 'output window, operand 0, single buffered']
    #allocation3 [shape = 's32[1]{0}', space=sflag, size = 0x4, scoped, tag = 'scoped memory for tpu_custom_call.1']
    %8 = vsyncpa [#allocation3], 0
    // Predicated region
    $region2: #{tpu_custom_call.1} parent=1 // pred_check
      _
    $region3: #{tpu_custom_call.1} parent=1 // pred_check_branch
      %10 = sbr.rel (0) target = $region5
    $region4: #{tpu_custom_call.1} parent=1 // pred_region
      _
    $region5: #{tpu_custom_call.1} parent=1 // pred_fallthru
      _
    // Predicated region
    $region6: #{tpu_custom_call.1} parent=1 // pred_check
      _
    $region7: #{tpu_custom_call.1} parent=1 // pred_check_branch
      %12 = sbr.rel (0) target = $region9
    $region8: #{tpu_custom_call.1} parent=1 // pred_region
      _
    $region9: #{tpu_custom_call.1} parent=1 // pred_fallthru
      _
    // Predicated region
    $region10: #{tpu_custom_call.1} parent=1 // pred_check
      _
    $region11: #{tpu_custom_call.1} parent=1 // pred_check_branch
      %14 = sbr.rel (0) target = $region13
    $region12: #{tpu_custom_call.1} parent=1 // pred_region
      _
    $region13: #{tpu_custom_call.1} parent=1 // pred_fallthru
      _
    %v16 = vld [vmem:[%s0] sm:$0xff]
    %v17 = vpack.c.bf16 %v16, %v16
    %v18 = vld [vmem:[%s1] sm:$0xf]
    %v19 = vld [vmem:[%s1 + $0x4] sm:$0xf]
    %v20 = vld [vmem:[%s1 + $0x8] sm:$0xf]
    %v21 = vld [vmem:[%s1 + $0xc] sm:$0xf]
    %v26 = vunpack.c.l.b16 %v18
    %v27 = vunpack.c.l.b16 %v19
    %v28 = vunpack.c.l.b16 %v20
    %v29 = vunpack.c.l.b16 %v21
    %v30 = vpack.c.b16 %v27, %v26
    %v31 = vpack.c.b16 %v29, %v28
    %vm34 = vcmask 261120
    %v36 = vsel %vm34, %v17, 0
    %38 = vmatprep.subr.bf16.mxu0 0
    %39 = vmatpush1.bf16.msra.mxu0 %v30
    %40 = vmatprep.subr.bf16.mxu0 0
    %41 = vmatpush1.bf16.msra.mxu0 %v31
    %42 = vmatprep.subr.bf16.mxu0 0
    %43 = vmatpush1.bf16.msra.mxu0 0
    %44 = vmatprep.subr.bf16.mxu0 0
    %45 = vmatpush1.bf16.msra.mxu0 0
    %46 = vmatprep.subr.bf16.mxu0 0
    %47 = vmatpush1.bf16.msra.mxu0 0
    %48 = vmatprep.subr.bf16.mxu0 0
    %49 = vmatpush1.bf16.msra.mxu0 0
    %50 = vmatprep.subr.bf16.mxu0 0
    %51 = vmatpush1.bf16.msra.mxu0 0
    %52 = vmatprep.subr.bf16.mxu0 0
    %53 = vmatpush1.bf16.msra.mxu0 0
    %54 = vmatprep.subr.bf16.mxu0 0
    %55 = vmatpush1.bf16.msra.mxu0 0
    %56 = vmatprep.subr.bf16.mxu0 0
    %57 = vmatpush1.bf16.msra.mxu0 0
    %58 = vmatprep.subr.bf16.mxu0 0
    %59 = vmatpush1.bf16.msra.mxu0 0
    %60 = vmatprep.subr.bf16.mxu0 0
    %61 = vmatpush1.bf16.msra.mxu0 0
    %62 = vmatprep.subr.bf16.mxu0 0
    %63 = vmatpush1.bf16.msra.mxu0 0
    %64 = vmatprep.subr.bf16.mxu0 0
    %65 = vmatpush1.bf16.msra.mxu0 0
    %66 = vmatprep.subr.bf16.mxu0 0
    %67 = vmatpush1.bf16.msra.mxu0 0
    %68 = vmatprep.subr.bf16.mxu0 0
    %69 = vmatpush1.bf16.msra.mxu0 0
    %70 = vmatprep.mubr.bf16.mxu0 0
    %71 = vmatmul.mubr.bf16.gmra.mrb[0].mxu0 %v36
    %v72 = vpop.f32.mrb[0].mxu0
    %v73 = vadd.f32 0.0, %v72
    %v74 = vpop.f32.mrb[0].mxu0
    %v75 = vpop.f32.mrb[0].mxu0
    %v76 = vpop.f32.mrb[0].mxu0
    %77 = vdwg.mxu0
    %v78 = vmax.f32 %v73, 0.0
    %v79 = vpack.c.bf16 %v78, %v78
    %v80 = vld [vmem:[%s2] sm:$0xf]
    %vm81 = vcmask 64512
    %v83 = vsel %vm81, %v79, 0
    %vm85 = vcmask 1043456
    %v87 = vsel %vm85, %v80, 0
    %89 = vmatprep.subr.bf16.mxu0 0
    %90 = vmatpush1.bf16.msra.mxu0 %v87
    %91 = vmatprep.subr.bf16.mxu0 0
    %92 = vmatpush1.bf16.msra.mxu0 0
    %93 = vmatprep.subr.bf16.mxu0 0
    %94 = vmatpush1.bf16.msra.mxu0 0
    %95 = vmatprep.subr.bf16.mxu0 0
    %96 = vmatpush1.bf16.msra.mxu0 0
    %97 = vmatprep.subr.bf16.mxu0 0
    %98 = vmatpush1.bf16.msra.mxu0 0
    %99 = vmatprep.subr.bf16.mxu0 0
    %100 = vmatpush1.bf16.msra.mxu0 0
    %101 = vmatprep.subr.bf16.mxu0 0
    %102 = vmatpush1.bf16.msra.mxu0 0
    %103 = vmatprep.subr.bf16.mxu0 0
    %104 = vmatpush1.bf16.msra.mxu0 0
    %105 = vmatprep.subr.bf16.mxu0 0
    %106 = vmatpush1.bf16.msra.mxu0 0
    %107 = vmatprep.subr.bf16.mxu0 0
    %108 = vmatpush1.bf16.msra.mxu0 0
    %109 = vmatprep.subr.bf16.mxu0 0
    %110 = vmatpush1.bf16.msra.mxu0 0
    %111 = vmatprep.subr.bf16.mxu0 0
    %112 = vmatpush1.bf16.msra.mxu0 0
    %113 = vmatprep.subr.bf16.mxu0 0
    %114 = vmatpush1.bf16.msra.mxu0 0
    %115 = vmatprep.subr.bf16.mxu0 0
    %116 = vmatpush1.bf16.msra.mxu0 0
    %117 = vmatprep.subr.bf16.mxu0 0
    %118 = vmatpush1.bf16.msra.mxu0 0
    %119 = vmatprep.subr.bf16.mxu0 0
    %120 = vmatpush1.bf16.msra.mxu0 0
    %121 = vmatprep.mubr.bf16.mxu0 0
    %122 = vmatmul.mubr.bf16.gmra.mrb[0].mxu0 %v83
    %v123 = vpop.f32.mrb[0].mxu0
    %v124 = vadd.f32 0.0, %v123
    %v125 = vpop.f32.mrb[0].mxu0
    %v126 = vpop.f32.mrb[0].mxu0
    %v127 = vpop.f32.mrb[0].mxu0
    %128 = vdwg.mxu0
    %v129 = vmax.f32 %v124, 0.0
    %130 = vst.msk [vmem:[#allocation2] sm:$0xff] %vm34, %v129
    // Predicated region
    $region14: #{tpu_custom_call.1} parent=1 // pred_check
      _
    $region15: #{tpu_custom_call.1} parent=1 // pred_check_branch
      %132 = sbr.rel (0) target = $region17
    $region16: #{tpu_custom_call.1} parent=1 // pred_region
      %s134 = ssub.s32 128, 128
      %135 = vsyncadd [#allocation3], %s134
      %s137 = sshll.u32 [#allocation2], 4
      %s138 = int_to_ptr.vmem [resolvable:$true] %s137
      %140 = dma.vmem_to_hbm [thread:$0]  %s138, 128, %s3, [#allocation3]
    $region17: #{tpu_custom_call.1} parent=1 // pred_fallthru
      _
    // Predicated region
    $region18: #{tpu_custom_call.1} parent=1 // pred_check
      _
    $region19: #{tpu_custom_call.1} parent=1 // pred_check_branch
      %142 = sbr.rel (0) target = $region21
    $region20: #{tpu_custom_call.1} parent=1 // pred_region
      %143 = dma.done [#allocation3], 128
    $region21: #{tpu_custom_call.1} parent=1 // pred_fallthru
      _
    %144 = vsyncpa [#allocation3], 1

</llo_original>
